<compile_context>
chip_gen: v6e
topology: v6e:2x2x1
jax: 0.10.0
libtpu: 0.0.40
codegen_flags: <defaults>
</compile_context>

<pallas_src>
import jax
import jax.numpy as jnp
from jax.experimental import pallas as pl
from jax.experimental.pallas import tpu as pltpu


_LANE = 128                      # TPU vreg lane width
_MAX_PACKED_LANES = 4096         # cap on the packed last-dim width
_SMALL_TENSOR_BYTES = 4 * 1024 * 1024   # below this, don't force deep grids
_MIN_STEPS_LARGE = 8             # min grid steps for tensors > _SMALL_TENSOR_BYTES


def _learnable_bias_kernel(x_ref, b_ref, o_ref):
    # x_ref: (tm, tn) tile; b_ref: (1, tn) grid-row-invariant bias tile;
    # o_ref: (tm, tn) output tile.  Pure VPU elementwise add (DMA-bound).
    o_ref[...] = x_ref[...] + b_ref[...]


def _tpu_budgets():
    """Per-generation (working_set_bytes, vmem_limit_bytes, num_tensorcores)."""
    mib = 1024 * 1024
    kind = ""
    try:
        kind = jax.devices()[0].device_kind.lower().replace(" ", "")
    except Exception:
        pass

    if "v7" in kind or "tpu7" in kind:
        # v7x: 3.2 TB/s HBM but only 64 MiB VMEM per TC, 2 TCs per chip.
        ws, limit, cores = 32 * mib, 48 * mib, 2
    elif "v6" in kind:
        # v6e: 128 MiB VMEM, 1 TC.
        ws, limit, cores = 32 * mib, 64 * mib, 1
    elif "v5" in kind:
        # v5e/v5p: slower HBM, smaller blocks already amortize step overhead.
        ws, limit, cores = 16 * mib, 24 * mib, 1
    else:
        ws, limit, cores = 16 * mib, 32 * mib, 1

    # If the runtime can tell us the real VMEM capacity, stay well below it.
    try:
        info = pltpu.get_tpu_info()
        cap = getattr(info, "vmem_capacity_bytes", None)
        if cap:
            limit = min(limit, (3 * cap) // 4)
            ws = min(ws, max(8 * mib, limit - 8 * mib))
    except Exception:
        pass
    return ws, limit, cores


def _choose_pack_factor(m, c):
    """Largest k dividing m with k*c <= cap, preferring (k*c) % 128 == 0."""
    cap = max(_MAX_PACKED_LANES, c)  # never force k below 1
    divisors = []
    i = 1
    while i * i <= m:
        if m % i == 0:
            divisors.append(i)
            divisors.append(m // i)
        i += 1
    best_aligned, best_any = 1, 1
    for k in divisors:
        if k * c > cap:
            continue
        if k > best_any:
            best_any = k
        if (k * c) % _LANE == 0 and k > best_aligned:
            best_aligned = k
    if best_aligned > 1 or c % _LANE == 0:
        return best_aligned
    return best_any  # no 128-aligned packing exists; still maximize lane density


def learnable_bias(x, bias):
    """out = x + bias (broadcast along the last axis), as a Pallas TPU kernel.

    x   : (..., C) array (channels-last, matching the trailing-dim expand_as)
    bias: (C,) array
    """
    assert x.ndim >= 1 and x.shape[-1] == bias.shape[0], (
        "bias must match the last dim of x (PyTorch expand_as trailing broadcast)")
    orig_shape = x.shape
    out_dtype = jnp.result_type(x.dtype, bias.dtype)  # PyTorch-style promotion

    # Degenerate inputs (zero-size tensors): nothing to do.
    if x.size == 0:
        return x.astype(out_dtype).reshape(orig_shape)

    c = x.shape[-1]
    m = x.size // c
    dtype_bytes = jnp.dtype(out_dtype).itemsize
    # Sublane granularity: f32 -> 8, bf16 -> 16, int8/fp8 -> 32.
    sub = max(8, 32 // max(1, dtype_bytes))

    ws_bytes, vmem_limit, num_cores = _tpu_budgets()
    per_buffer = ws_bytes // 4  # 2 input + 2 output tile buffers (bias ~free)

    # ---- lane-dense packing: fold k original rows into one kernel row -------
    k = _choose_pack_factor(m, c)
    lanes = k * c
    rows = m // k

    x2d = x.reshape(rows, lanes).astype(out_dtype)
    bias_row = jnp.tile(bias.astype(out_dtype), k).reshape(1, lanes)

    # ---- lane tiling (2nd grid axis) only if a sub-row block is too big -----
    if sub * lanes * dtype_bytes > per_buffer and lanes > _LANE:
        tn = (per_buffer // (sub * dtype_bytes) // _LANE) * _LANE
        tn = max(_LANE, min(tn, lanes))
    else:
        tn = lanes
    lane_steps = pl.cdiv(lanes, tn)

    # ---- row tile: biggest tile whose double-buffered in+out fits the budget
    tm = per_buffer // (tn * dtype_bytes)
    tm = max(sub, (tm // sub) * sub)

    # ---- guarantee pipeline depth -------------------------------------------
    total_bytes = rows * lanes * dtype_bytes
    if total_bytes > _SMALL_TENSOR_BYTES:
        # Enough grid steps that input DMA / add / output DMA truly overlap
        # (>= 8 steps overall, >= 4 per TensorCore on v7x).
        target_steps = max(_MIN_STEPS_LARGE, 4 * num_cores)
        needed_rows = max(1, pl.cdiv(target_steps, lane_steps))
        tm_cap = max(sub, (rows // needed_rows // sub) * sub)
        tm = min(tm, tm_cap)
    elif num_cores >= 2 and rows >= 2 * sub:
        # v7x only: make sure both TensorCores get at least one row block.
        tm_half = ((pl.cdiv(rows, 2) + sub - 1) // sub) * sub
        if tm_half < rows:
            tm = min(tm, tm_half)

    if tm >= rows:
        tm = rows  # full-extent block is always legal
    row_steps = pl.cdiv(rows, tm)
    grid = (row_steps, lane_steps)  # partial last blocks are masked by Pallas

    out2d = pl.pallas_call(
        _learnable_bias_kernel,
        out_shape=jax.ShapeDtypeStruct((rows, lanes), out_dtype),
        grid_spec=pltpu.PrefetchScalarGridSpec(
            num_scalar_prefetch=0,
            grid=grid,
            in_specs=[
                pl.BlockSpec((tm, tn), lambda i, j: (i, j)),
                pl.BlockSpec((1, tn), lambda i, j: (0, j)),  # row-invariant bias
            ],
            out_specs=pl.BlockSpec((tm, tn), lambda i, j: (i, j)),
        ),
        compiler_params=pltpu.CompilerParams(
            dimension_semantics=("parallel", "parallel"),
            vmem_limit_bytes=vmem_limit,
        ),
    )(x2d, bias_row)

    return out2d.reshape(orig_shape)


class LearnableBiasPallas:
    """JAX/Pallas counterpart of the PyTorch LearnableBias module (forward only)."""

    def __init__(self, out_chn, dtype=jnp.float32):
        # PyTorch init: torch.zeros(out_chn)
        self.bias = jnp.zeros((out_chn,), dtype=dtype)

    def __call__(self, x):
        return learnable_bias(x, self.bias)


if __name__ == "__main__":
    key = jax.random.PRNGKey(0)

    # --- main check: channels-last NHWC, lane-dense packed path ---------------
    N, H, W, C = 2, 16, 16, 8
    x = jax.random.normal(key, (N, H, W, C), dtype=jnp.float32)
    module = LearnableBiasPallas(out_chn=C)
    module.bias = jnp.arange(C, dtype=jnp.float32) * 0.1  # non-trivial bias
    out = jax.block_until_ready(module(x))
    ref = x + module.bias.reshape(1, 1, 1, C)
    assert out.shape == x.shape and out.dtype == x.dtype
    assert jnp.allclose(out, ref, atol=1e-6), "mismatch vs reference (f32 NHWC)"

    # --- secondary check: non-128-aligned channel count -----------------------
    k2 = jax.random.PRNGKey(0)
    x2 = jax.random.normal(k2, (3, 2, 200), dtype=jnp.float32)
    b2 = jnp.linspace(-1.0, 1.0, 200, dtype=jnp.float32)
    out2 = jax.block_until_ready(learnable_bias(x2, b2))
    assert jnp.allclose(out2, x2 + b2, atol=1e-6), "mismatch vs reference (C=200)"

    # --- dtype-promotion check: bf16 activations + f32 bias -> f32 out --------
    x3 = jax.random.normal(k2, (4, 8, 32), dtype=jnp.bfloat16)
    b3 = jnp.arange(32, dtype=jnp.float32) * 0.01
    out3 = jax.block_until_ready(learnable_bias(x3, b3))
    ref3 = x3 + b3  # jnp promotes to f32, same as PyTorch
    assert out3.dtype == ref3.dtype
    assert jnp.allclose(out3, ref3, atol=1e-6), "mismatch vs reference (bf16+f32)"

    print("KERNEL_OK")
</pallas_src>

<mosaic_0001>
module attributes {stable_mosaic.version = 11 : i64} {
  func.func @_learnable_bias_kernel(%arg0: i32, %arg1: i32, %arg2: memref<1x4096xf32, #tpu.memory_space<vmem>>, %arg3: memref<1x4096xf32, #tpu.memory_space<vmem>>, %arg4: memref<1x4096xf32, #tpu.memory_space<vmem>>) attributes {dimension_semantics = [#tpu.dimension_semantics<parallel>, #tpu.dimension_semantics<parallel>], iteration_bounds = array<i64: 1, 1>, scalar_prefetch = 0 : i64, scratch_operands = 0 : i64, tpu.core_type = #tpu.core_type<tc>, window_params = [{transform_indices = @transform_0, window_bounds = array<i64: 1, 4096>}, {transform_indices = @transform_1, window_bounds = array<i64: 1, 4096>}, {transform_indices = @transform_2, window_bounds = array<i64: 1, 4096>}]} {
    %c0 = arith.constant 0 : index
    %c0_0 = arith.constant 0 : index
    %0 = vector.load %arg2[%c0, %c0_0] : memref<1x4096xf32, #tpu.memory_space<vmem>>, vector<1x4096xf32>
    %c0_1 = arith.constant 0 : index
    %c0_2 = arith.constant 0 : index
    %1 = vector.load %arg3[%c0_1, %c0_2] : memref<1x4096xf32, #tpu.memory_space<vmem>>, vector<1x4096xf32>
    %2 = arith.addf %0, %1 : vector<1x4096xf32>
    %c0_3 = arith.constant 0 : index
    %c0_4 = arith.constant 0 : index
    %3 = vector.load %arg4[%c0_3, %c0_4] : memref<1x4096xf32, #tpu.memory_space<vmem>>, vector<1x4096xf32>
    tpu.vector_store %arg4[%c0_3, %c0_4], %2 {strides = array<i32>} : memref<1x4096xf32, #tpu.memory_space<vmem>>, vector<1x4096xf32>,
    return
  }
  func.func @transform_0(%arg0: i32, %arg1: i32) -> (i32, i32) {
    %c0_i32 = arith.constant 0 : i32
    return %arg0, %arg1 : i32, i32
  }
  func.func @transform_1(%arg0: i32, %arg1: i32) -> (i32, i32) {
    %c0_i32 = arith.constant 0 : i32
    %c0_i32_0 = arith.constant 0 : i32
    return %c0_i32, %arg1 : i32, i32
  }
  func.func @transform_2(%arg0: i32, %arg1: i32) -> (i32, i32) {
    %c0_i32 = arith.constant 0 : i32
    return %arg0, %arg1 : i32, i32
  }
}

</mosaic_0001>

<llo_original>
// kernel: tpu_custom_call.1
$region0: #{tpu_custom_call.1}
  #allocation0 [shape = 'u32[]', space=smem, size = 0x4, offset = 0x4, fixed_abs, tag = 'smem constant byte address 0x4 - core index']
  #allocation1 [shape = 'u32[144,128]{1,0:T(1,128)}', space=vmem, size = 0x12000, scoped, tag = 'internal scratch']
  %s0 = inlined_call_operand.hbm [shape: f32[1,4096], index: 0, kind: input, shape index: {}]
  %s1 = inlined_call_operand.hbm [shape: f32[1,4096], index: 1, kind: input, shape index: {}]
  %s2 = inlined_call_operand.hbm [shape: f32[1,4096], index: 2, kind: output, shape index: {}]
  %s3 = sld [smem:[#allocation0]]
  $region26: #{tpu_custom_call.1} parent=0
    _
  %s5 = ssub.s32 1, %s3
  %s6 = scalar_select 0, %s5, %s3
  $region1: #{tpu_custom_call.1} parent=0
    #allocation2 [shape = 'u8[16384]{0}', space=vmem, size = 0x4000, scoped, tag = 'input window, operand 0, single buffered']
    #allocation3 [shape = 's32[1]{0}', space=sflag, size = 0x4, scoped, tag = 'scoped memory for tpu_custom_call.1']
    #allocation4 [shape = 's32[1]{0}', space=sflag, size = 0x4, scoped, tag = 'scoped memory for tpu_custom_call.1']
    #allocation5 [shape = 'u8[16384]{0}', space=vmem, size = 0x4000, scoped, tag = 'input window, operand 1, single buffered']
    #allocation6 [shape = 's32[1]{0}', space=sflag, size = 0x4, scoped, tag = 'scoped memory for tpu_custom_call.1']
    #allocation7 [shape = 'u8[16384]{0}', space=vmem, size = 0x4000, scoped, tag = 'output window, operand 0, single buffered']
    %7 = vsyncpa [#allocation3], 0
    %8 = vsyncpa [#allocation6], 0
    %9 = vsyncpa [#allocation4], 0
    // Predicated region
    $region2: #{tpu_custom_call.1} parent=1 // pred_check
      _
    $region3: #{tpu_custom_call.1} parent=1 // pred_check_branch
      %11 = sbr.rel (0) target = $region5
    $region4: #{tpu_custom_call.1} parent=1 // pred_region
      %s13 = ssub.s32 512, 512
      %14 = vsyncadd [#allocation3], %s13
      %s16 = sshll.u32 [#allocation2], 4
      %s17 = int_to_ptr.vmem [resolvable:$true] %s16
      %19 = dma.hbm_to_vmem [thread:$0]  %s0, 512, %s17, [#allocation3]
    $region5: #{tpu_custom_call.1} parent=1 // pred_fallthru
      _
    // Predicated region
    $region6: #{tpu_custom_call.1} parent=1 // pred_check
      _
    $region7: #{tpu_custom_call.1} parent=1 // pred_check_branch
      %21 = sbr.rel (0) target = $region9
    $region8: #{tpu_custom_call.1} parent=1 // pred_region
      %s23 = ssub.s32 512, 512
      %24 = vsyncadd [#allocation6], %s23
      %s26 = sshll.u32 [#allocation5], 4
      %s27 = int_to_ptr.vmem [resolvable:$true] %s26
      %29 = dma.hbm_to_vmem [thread:$0]  %s1, 512, %s27, [#allocation6]
    $region9: #{tpu_custom_call.1} parent=1 // pred_fallthru
      _
    // Predicated region
    $region10: #{tpu_custom_call.1} parent=1 // pred_check
      _
    $region11: #{tpu_custom_call.1} parent=1 // pred_check_branch
      %31 = sbr.rel (0) target = $region13
    $region12: #{tpu_custom_call.1} parent=1 // pred_region
      %32 = dma.done [#allocation3], 512
    $region13: #{tpu_custom_call.1} parent=1 // pred_fallthru
      _
    // Predicated region
    $region14: #{tpu_custom_call.1} parent=1 // pred_check
      _
    $region15: #{tpu_custom_call.1} parent=1 // pred_check_branch
      %34 = sbr.rel (0) target = $region17
    $region16: #{tpu_custom_call.1} parent=1 // pred_region
      %35 = dma.done [#allocation6], 512
    $region17: #{tpu_custom_call.1} parent=1 // pred_fallthru
      _
    %v36 = vld [vmem:[#allocation2] sm:$0xff]
    %v37 = vld [vmem:[#allocation2 + $0x8] sm:$0xff]
    %v38 = vld [vmem:[#allocation2 + $0x10] sm:$0xff]
    %v39 = vld [vmem:[#allocation2 + $0x18] sm:$0xff]
    %v40 = vld [vmem:[#allocation5] sm:$0xff]
    %v41 = vld [vmem:[#allocation5 + $0x8] sm:$0xff]
    %v42 = vld [vmem:[#allocation5 + $0x10] sm:$0xff]
    %v43 = vld [vmem:[#allocation5 + $0x18] sm:$0xff]
    %v44 = vadd.f32 %v36, %v40
    %v45 = vadd.f32 %v37, %v41
    %v46 = vadd.f32 %v38, %v42
    %v47 = vadd.f32 %v39, %v43
    %48 = vst [vmem:[#allocation7] sm:$0xff] %v44
    %49 = vst [vmem:[#allocation7 + $0x8] sm:$0xff] %v45
    %50 = vst [vmem:[#allocation7 + $0x10] sm:$0xff] %v46
    %51 = vst [vmem:[#allocation7 + $0x18] sm:$0xff] %v47
    // Predicated region
    $region18: #{tpu_custom_call.1} parent=1 // pred_check
      _
    $region19: #{tpu_custom_call.1} parent=1 // pred_check_branch
      %53 = sbr.rel (0) target = $region21
    $region20: #{tpu_custom_call.1} parent=1 // pred_region
      %s55 = ssub.s32 512, 512
      %56 = vsyncadd [#allocation4], %s55
      %s58 = sshll.u32 [#allocation7], 4
      %s59 = int_to_ptr.vmem [resolvable:$true] %s58
      %61 = dma.vmem_to_hbm [thread:$0]  %s59, 512, %s2, [#allocation4]
    $region21: #{tpu_custom_call.1} parent=1 // pred_fallthru
      _
    // Predicated region
    $region22: #{tpu_custom_call.1} parent=1 // pred_check
      _
    $region23: #{tpu_custom_call.1} parent=1 // pred_check_branch
      %63 = sbr.rel (0) target = $region25
    $region24: #{tpu_custom_call.1} parent=1 // pred_region
      %64 = dma.done [#allocation4], 512
    $region25: #{tpu_custom_call.1} parent=1 // pred_fallthru
      _
    %65 = vsyncpa [#allocation3], 1
    %66 = vsyncpa [#allocation6], 1
    %67 = vsyncpa [#allocation4], 1

</llo_original>
